<compile_context>
chip_gen: v6e
topology: v6e:2x2x1
jax: 0.10.0
libtpu: 0.0.40
codegen_flags: <defaults>
</compile_context>

<pallas_src>
import numpy as np
import jax
import jax.numpy as jnp
from jax.experimental import pallas as pl
from jax.experimental.pallas import tpu as pltpu


def _round_up(v, m):
    return ((v + m - 1) // m) * m


# ---------------------------------------------------------------------------
# Pallas kernels
# ---------------------------------------------------------------------------
def _gram_tile_kernel(ti_ref, tj_ref, xi_ref, xj_ref, c_ref, acc_ref):
    # ti_ref / tj_ref: SMEM scalar-prefetch tile lists (upper-triangle pairs).
    # xi_ref / xj_ref: (dk, tn) bf16 column blocks of the pre-normalized input.
    # C tile = xi^T . xj accumulated in f32 VMEM scratch across the trailing
    # "arbitrary" K axis; lane-dense bf16 store on the last K step.
    k = pl.program_id(1)

    @pl.when(k == 0)
    def _():
        acc_ref[...] = jnp.zeros_like(acc_ref)

    acc_ref[...] += jax.lax.dot_general(
        xi_ref[...], xj_ref[...],
        dimension_numbers=(((0,), (0,)), ((), ())),
        preferred_element_type=jnp.float32,
    )

    @pl.when(k == pl.num_programs(1) - 1)
    def _():
        c_ref[...] = acc_ref[...].astype(c_ref.dtype)


def _masked_mean_kernel(m_ref, x_ref, o_ref):
    # m_ref: (1, n) f32 mask already pre-scaled by 1/count on the host.
    # x_ref: (d, n) f32, full (un-padded) VMEM blocks.
    # Output (1, d): d lands on the lane axis; no in-kernel reduce or divide.
    o_ref[...] = jax.lax.dot_general(
        m_ref[...], x_ref[...],
        dimension_numbers=(((1,), (1,)), ((), ())),
        preferred_element_type=jnp.float32,
    )


# ---------------------------------------------------------------------------
# Jitted device wrappers
# ---------------------------------------------------------------------------
@jax.jit
def _gram_upper_device(x2d):
    """Upper-triangular tile blocks of the n x n cosine-similarity matrix.

    Returns a (n_pad, n_pad) bf16 array whose i<=j element blocks are valid;
    the lower triangle is left unwritten and mirrored on the host.
    """
    d, n = x2d.shape

    # Normalize columns BEFORE the Gram matmul (f32 math, eps clamp against
    # zero-norm columns) -> bf16 MXU operands.  Fuses into one XLA fusion.
    xf = x2d.astype(jnp.float32)
    norm_sq = jnp.sum(xf * xf, axis=0, keepdims=True)
    inv_norm = jax.lax.rsqrt(jnp.maximum(norm_sq, jnp.float32(1e-16)))
    xn = (xf * inv_norm).astype(jnp.bfloat16)

    # n (lane / output tile axis): 256 floor so a tile always fills the
    # 2x256x256 MXU on v6e/v7x; 512 when it divides.
    n_pad = _round_up(n, 256)
    tn = 512 if n_pad % 512 == 0 else 256
    # d (contraction axis): un-blocked while the per-tile footprint is small;
    # K-blocked at dk=512 once d is large enough to threaten the scoped-VMEM
    # limits (v5e 16 MiB / v7x 32 MiB default).
    if d <= 1024:
        d_pad = _round_up(d, 16)          # bf16 sublane packing
        dk = d_pad
    else:
        d_pad = _round_up(d, 512)
        dk = 512
    kt = d_pad // dk

    xn = jnp.pad(xn, ((0, d_pad - d), (0, n_pad - n)))

    # Triangular (i <= j) tile list, scalar-prefetched into SMEM.
    nb = n_pad // tn
    iu, ju = np.triu_indices(nb)
    ti = jnp.asarray(iu, dtype=jnp.int32)
    tj = jnp.asarray(ju, dtype=jnp.int32)
    num_tiles = int(iu.shape[0])

    return pl.pallas_call(
        _gram_tile_kernel,
        out_shape=jax.ShapeDtypeStruct((n_pad, n_pad), jnp.bfloat16),
        grid_spec=pltpu.PrefetchScalarGridSpec(
            num_scalar_prefetch=2,
            grid=(num_tiles, kt),
            in_specs=[
                pl.BlockSpec((dk, tn), lambda t, k, ti, tj: (k, ti[t])),
                pl.BlockSpec((dk, tn), lambda t, k, ti, tj: (k, tj[t])),
            ],
            out_specs=pl.BlockSpec((tn, tn), lambda t, k, ti, tj: (ti[t], tj[t])),
            scratch_shapes=[pltpu.VMEM((tn, tn), jnp.float32)],
        ),
        # Tile axis: independent, disjoint output tiles (megacore-shardable on
        # v7x).  K (reduction) axis: trailing + arbitrary for the accumulator.
        compiler_params=pltpu.CompilerParams(
            dimension_semantics=("parallel", "arbitrary")),
    )(ti, tj, xn, xn)


@jax.jit
def _masked_mean_device(x2d, mask_scaled):
    """sum(x2d * mask_scaled, axis=1) -> (d, 1), single un-padded VMEM GEMV."""
    # TODO(synk): for very large d*n (> ~30 MiB on v7x) this single-block GEMV
    # should be gridded over n with an f32 accumulator output.
    d, n = x2d.shape
    out = pl.pallas_call(
        _masked_mean_kernel,
        out_shape=jax.ShapeDtypeStruct((1, d), jnp.float32),
        in_specs=[
            pl.BlockSpec(memory_space=pltpu.MemorySpace.VMEM),
            pl.BlockSpec(memory_space=pltpu.MemorySpace.VMEM),
        ],
        out_specs=pl.BlockSpec(memory_space=pltpu.MemorySpace.VMEM),
    )(mask_scaled, x2d.astype(jnp.float32))
    return out.reshape(d, 1)


# ---------------------------------------------------------------------------
# Host-facing wrappers
# ---------------------------------------------------------------------------
def cosine_similarity_matrix_np(x2d):
    """Cosine similarity between the n columns of x2d (d, n) -> (n, n) float64 numpy."""
    n = int(x2d.shape[1])
    # device_get the padded bf16 matrix; slice / mirror / up-convert on host
    # (avoids an extra on-device slice copy; halves the PCIe transfer).
    c_pad = np.asarray(jax.device_get(_gram_upper_device(x2d)))
    c_upper = c_pad[:n, :n].astype(np.float64)
    return np.triu(c_upper) + np.triu(c_upper, 1).T


def masked_column_mean(x2d, cols):
    """mean(x2d[:, cols], axis=1, keepdims=True) -> (d, 1) f32 device array."""
    d, n = x2d.shape
    count = len(cols)
    assert count > 0, "empty column selection"
    mask = np.zeros((1, n), dtype=np.float32)
    mask[0, np.asarray(cols, dtype=np.int64)] = np.float32(1.0 / count)
    return _masked_mean_device(x2d, jnp.asarray(mask))


# ---------------------------------------------------------------------------
# Host-side replication of `density` / greedy loop in `fun`
# ---------------------------------------------------------------------------
def _greedy_remove(c_mat):
    # Incremental replication of the reference greedy loop: density deltas are
    # tracked from cached row/column sums (O(n^2) total) instead of the
    # reference's two np.delete copies per step (O(n^3)); decisions are
    # identical.  The candidate at step k is always original node k.
    n = c_mat.shape[0]
    row_sums = c_mat.sum(axis=1)
    col_sums = c_mat.sum(axis=0)
    total = float(c_mat.sum())
    m = n
    h = []
    for k in range(n):
        o = total / m
        if m > 1:
            new_total = total - row_sums[k] - col_sums[k] + c_mat[k, k]
            d_new = new_total / (m - 1)
        else:
            # TODO(synk): reference indexes an empty matrix here (crash);
            # treat the removal as rejected instead.
            new_total = total
            d_new = -np.inf
        if o < d_new:
            total = new_total
            m -= 1
            row_sums = row_sums - c_mat[:, k]
            col_sums = col_sums - c_mat[k, :]
            h.append(k)
    return h


def _offdiag_median(sub):
    k = sub.shape[0]
    if k < 2:
        return np.nan
    return float(np.median(sub[~np.eye(k, dtype=bool)]))


def net_forward(inp):
    """inp: (1, d, n)  ->  (out (d, 1) jnp f32 array, attackers list[int])."""
    n = int(inp.shape[-1])
    x2d = jnp.squeeze(inp, axis=0)  # (d, n)

    # TODO(synk): `C` is undefined in the reference; assumed to be the n x n
    # cosine-similarity matrix between the n column vectors (used for both
    # r = C(input, n) and r2 = C(input.squeeze(0), n)).
    c_mat = cosine_similarity_matrix_np(x2d)

    h = _greedy_remove(c_mat)
    h_set = set(h)
    in_h = [i for i in range(n) if i in h_set]
    not_h = [i for i in range(n) if i not in h_set]

    avg = _offdiag_median(c_mat[np.ix_(in_h, in_h)])
    den = _offdiag_median(c_mat[np.ix_(not_h, not_h)])

    if len(h) < 2:
        cols, attackers = not_h, in_h
    elif len(h) > n - 2:
        cols, attackers = in_h, not_h
    elif den < avg:
        cols, attackers = not_h, in_h
    elif den > avg:
        cols, attackers = in_h, not_h
    else:
        # TODO(synk): reference falls through (returns None) when den == avg
        # or a median is NaN; measure-zero for continuous inputs, use the
        # "not attackers" path.
        cols, attackers = not_h, in_h

    out = masked_column_mean(x2d, cols)  # (d, 1)
    return out, attackers


# ---------------------------------------------------------------------------
if __name__ == "__main__":
    key = jax.random.PRNGKey(0)
    d, n = 32, 8
    x = jax.random.normal(key, (1, d, n), dtype=jnp.float32)  # (1, d, n)

    out, attackers = net_forward(x)
    out = jax.block_until_ready(out)
    assert out.shape == (d, 1)
    assert bool(jnp.all(jnp.isfinite(out)))
    print("KERNEL_OK")
</pallas_src>

<mosaic_0001>
module attributes {stable_mosaic.version = 11 : i64} {
  func.func @_gram_tile_kernel(%arg0: i32, %arg1: i32, %arg2: memref<1xi32, #tpu.memory_space<smem>>, %arg3: memref<1xi32, #tpu.memory_space<smem>>, %arg4: memref<32x256xbf16, #tpu.memory_space<vmem>>, %arg5: memref<32x256xbf16, #tpu.memory_space<vmem>>, %arg6: memref<256x256xbf16, #tpu.memory_space<vmem>>, %arg7: memref<256x256xf32, #tpu.memory_space<vmem>>) attributes {dimension_semantics = [#tpu.dimension_semantics<parallel>, #tpu.dimension_semantics<arbitrary>], iteration_bounds = array<i64: 1, 1>, scalar_prefetch = 2 : i64, scratch_operands = 1 : i64, tpu.core_type = #tpu.core_type<tc>, window_params = [{transform_indices = @transform_0, window_bounds = array<i64: 32, 256>}, {transform_indices = @transform_1, window_bounds = array<i64: 32, 256>}, {transform_indices = @transform_2, window_bounds = array<i64: 256, 256>}]} {
    %c0_i32 = arith.constant 0 : i32
    %0 = arith.cmpi eq, %arg1, %c0_i32 : i32
    %1 = arith.extui %0 : i1 to i32
    %c0_i32_0 = arith.constant 0 : i32
    %2 = arith.cmpi ne, %1, %c0_i32_0 : i32
    scf.if %2 {
      %cst_10 = arith.constant 0.000000e+00 : f32
      %12 = vector.broadcast %cst_10 : f32 to vector<256x256xf32>
      %c0_11 = arith.constant 0 : index
      %c0_12 = arith.constant 0 : index
      %13 = vector.load %arg7[%c0_11, %c0_12] : memref<256x256xf32, #tpu.memory_space<vmem>>, vector<256x256xf32>
      tpu.vector_store %arg7[%c0_11, %c0_12], %12 {strides = array<i32>} : memref<256x256xf32, #tpu.memory_space<vmem>>, vector<256x256xf32>,
    } else {
    }
    %c0 = arith.constant 0 : index
    %c0_1 = arith.constant 0 : index
    %3 = vector.load %arg7[%c0, %c0_1] : memref<256x256xf32, #tpu.memory_space<vmem>>, vector<256x256xf32>
    %c0_2 = arith.constant 0 : index
    %c0_3 = arith.constant 0 : index
    %4 = vector.load %arg4[%c0_2, %c0_3] : memref<32x256xbf16, #tpu.memory_space<vmem>>, vector<32x256xbf16>
    %c0_4 = arith.constant 0 : index
    %c0_5 = arith.constant 0 : index
    %5 = vector.load %arg5[%c0_4, %c0_5] : memref<32x256xbf16, #tpu.memory_space<vmem>>, vector<32x256xbf16>
    %cst = arith.constant dense<0.000000e+00> : vector<256x256xf32>
    %6 = tpu.matmul %4, %5, %cst {dimension_numbers = #tpu.dot_dimension_numbers<[0], [0], [1], [1], [0, 1, 1, 1], [], []>} : vector<32x256xbf16>, vector<32x256xbf16>, vector<256x256xf32> -> vector<256x256xf32>
    %7 = arith.addf %3, %6 : vector<256x256xf32>
    %c0_6 = arith.constant 0 : index
    %c0_7 = arith.constant 0 : index
    %8 = vector.load %arg7[%c0_6, %c0_7] : memref<256x256xf32, #tpu.memory_space<vmem>>, vector<256x256xf32>
    tpu.vector_store %arg7[%c0_6, %c0_7], %7 {strides = array<i32>} : memref<256x256xf32, #tpu.memory_space<vmem>>, vector<256x256xf32>,
    %c0_i32_8 = arith.constant 0 : i32
    %9 = arith.cmpi eq, %arg1, %c0_i32_8 : i32
    %10 = arith.extui %9 : i1 to i32
    %c0_i32_9 = arith.constant 0 : i32
    %11 = arith.cmpi ne, %10, %c0_i32_9 : i32
    scf.if %11 {
      %c0_10 = arith.constant 0 : index
      %c0_11 = arith.constant 0 : index
      %12 = vector.load %arg7[%c0_10, %c0_11] : memref<256x256xf32, #tpu.memory_space<vmem>>, vector<256x256xf32>
      %13 = arith.truncf %12 : vector<256x256xf32> to vector<256x256xbf16>
      %c0_12 = arith.constant 0 : index
      %c0_13 = arith.constant 0 : index
      %14 = vector.load %arg6[%c0_12, %c0_13] : memref<256x256xbf16, #tpu.memory_space<vmem>>, vector<256x256xbf16>
      tpu.vector_store %arg6[%c0_12, %c0_13], %13 {strides = array<i32>} : memref<256x256xbf16, #tpu.memory_space<vmem>>, vector<256x256xbf16>,
    } else {
    }
    return
  }
  func.func @transform_0(%arg0: i32, %arg1: i32, %arg2: memref<1xi32, #tpu.memory_space<smem>>, %arg3: memref<1xi32, #tpu.memory_space<smem>>) -> (i32, i32) {
    %0 = arith.index_cast %arg0 : i32 to index
    %1 = memref.load %arg2[%0] : memref<1xi32, #tpu.memory_space<smem>>
    %c0_i32 = arith.constant 0 : i32
    return %arg1, %1 : i32, i32
  }
  func.func @transform_1(%arg0: i32, %arg1: i32, %arg2: memref<1xi32, #tpu.memory_space<smem>>, %arg3: memref<1xi32, #tpu.memory_space<smem>>) -> (i32, i32) {
    %0 = arith.index_cast %arg0 : i32 to index
    %1 = memref.load %arg3[%0] : memref<1xi32, #tpu.memory_space<smem>>
    %c0_i32 = arith.constant 0 : i32
    return %arg1, %1 : i32, i32
  }
  func.func @transform_2(%arg0: i32, %arg1: i32, %arg2: memref<1xi32, #tpu.memory_space<smem>>, %arg3: memref<1xi32, #tpu.memory_space<smem>>) -> (i32, i32) {
    %0 = arith.index_cast %arg0 : i32 to index
    %1 = memref.load %arg2[%0] : memref<1xi32, #tpu.memory_space<smem>>
    %2 = arith.index_cast %arg0 : i32 to index
    %3 = memref.load %arg3[%2] : memref<1xi32, #tpu.memory_space<smem>>
    %c0_i32 = arith.constant 0 : i32
    return %1, %3 : i32, i32
  }
}

</mosaic_0001>

<llo_original>
// kernel: _gram_upper_device.1
$region0: #{_gram_upper_device.1}
  #allocation0 [shape = 'u32[]', space=smem, size = 0x4, offset = 0x4, fixed_abs, tag = 'smem constant byte address 0x4 - core index']
  #allocation1 [shape = 'u32[144,128]{1,0:T(1,128)}', space=vmem, size = 0x12000, scoped, tag = 'internal scratch']
  #allocation2 [shape = 'f32[256,256]{1,0:T(8,128)}', space=vmem, size = 0x40000, scoped, tag = 'scratch operand']
  #allocation3 [shape = 's32[1]{0}', space=sflag, size = 0x4, scoped, tag = 'scoped memory for _gram_upper_device.1']
  #allocation4 [shape = 's32[1]{0:T(128)S(6)}', space=smem, size = 0x200, scoped, tag = 'prefetched SMEM operand 0']
  #allocation5 [shape = 's32[1]{0:T(128)S(6)}', space=smem, size = 0x200, scoped, tag = 'prefetched SMEM operand 1']
  %s0 = inlined_call_operand.<no memory space> [shape: s32[1], index: 0, kind: input, shape index: {}, may-alias: {0,1}]
  %s1 = inlined_call_operand.<no memory space> [shape: s32[1], index: 1, kind: input, shape index: {}, may-alias: {0,1}]
  %s2 = inlined_call_operand.vmem [shape: bf16[32,256], index: 2, kind: input, shape index: {}, may-alias: {2,3}]
  %s3 = inlined_call_operand.vmem [shape: bf16[32,256], index: 3, kind: input, shape index: {}, may-alias: {2,3}]
  %s4 = inlined_call_operand.hbm [shape: bf16[256,256], index: 4, kind: output, shape index: {}]
  %s5 = sld [smem:[#allocation0]]
  $region26: #{_gram_upper_device.1} parent=0
    _
  %s7 = ssub.s32 1, %s5
  %s8 = scalar_select 0, %s7, %s5
  %9 = sst [smem:[#allocation4]] %s0
  %10 = sst [smem:[#allocation5]] %s1
  $region1: #{_gram_upper_device.1} parent=0
    #allocation6 [shape = 'u8[131072]{0}', space=vmem, size = 0x20000, scoped, tag = 'output window, operand 0, single buffered']
    #allocation7 [shape = 's32[1]{0}', space=sflag, size = 0x4, scoped, tag = 'scoped memory for _gram_upper_device.1']
    %11 = vsyncpa [#allocation7], 0
    // Predicated region
    $region2: #{_gram_upper_device.1} parent=1 // pred_check
      _
    $region3: #{_gram_upper_device.1} parent=1 // pred_check_branch
      %13 = sbr.rel (0) target = $region5
    $region4: #{_gram_upper_device.1} parent=1 // pred_region
      %s14 = sld [smem:[#allocation4]]
      %s15 = smul.u32 2, %s14
      %p16 = scmp.lt.s32.totalorder %s15, 1
      %s17 = scalar_select %p16, %s15, 1
      %s18 = smul.addr %s17, 4
      %s19 = scalar_lea.vmem %s2, %s18
      %s20 = sld [smem:[#allocation4]]
      %s21 = smul.u32 2, %s20
    $region5: #{_gram_upper_device.1} parent=1 // pred_fallthru
      _
    // Predicated region
    $region6: #{_gram_upper_device.1} parent=1 // pred_check
      _
    $region7: #{_gram_upper_device.1} parent=1 // pred_check_branch
      %23 = sbr.rel (0) target = $region9
    $region8: #{_gram_upper_device.1} parent=1 // pred_region
      %s24 = sld [smem:[#allocation5]]
      %s25 = smul.u32 2, %s24
      %p26 = scmp.lt.s32.totalorder %s25, 1
      %s27 = scalar_select %p26, %s25, 1
      %s28 = smul.addr %s27, 4
      %s29 = scalar_lea.vmem %s3, %s28
      %s30 = sld [smem:[#allocation5]]
      %s31 = smul.u32 2, %s30
    $region9: #{_gram_upper_device.1} parent=1 // pred_fallthru
      _
    %s32 = sld [smem:[#allocation4]]
    %s33 = smul.u32 2, %s32
    %p34 = scmp.lt.s32.totalorder %s33, 1
    %s35 = scalar_select %p34, %s33, 1
    %s36 = smul.addr %s35, 4
    %s37 = scalar_lea.vmem %s2, %s36
    %s38 = sld [smem:[#allocation5]]
    %s39 = smul.u32 2, %s38
    %p40 = scmp.lt.s32.totalorder %s39, 1
    %s41 = scalar_select %p40, %s39, 1
    %s42 = smul.addr %s41, 4
    %s43 = scalar_lea.vmem %s3, %s42
    %s44 = sld [smem:[#allocation4]]
    %s45 = smul.u32 2, %s44
    %p46 = scmp.lt.s32.totalorder %s45, 1
    %s47 = scalar_select %p46, %s45, 1
    %s48 = smul.addr %s47, 4
    %s49 = scalar_lea.vmem %s2, %s48
    %s50 = sld [smem:[#allocation4]]
    %s51 = smul.u32 2, %s50
    %s52 = sld [smem:[#allocation5]]
    %s53 = smul.u32 2, %s52
    %p54 = scmp.lt.s32.totalorder %s53, 1
    %s55 = scalar_select %p54, %s53, 1
    %s56 = smul.addr %s55, 4
    %s57 = scalar_lea.vmem %s3, %s56
    %s58 = sld [smem:[#allocation5]]
    %s59 = smul.u32 2, %s58
    %s60 = sld [smem:[#allocation4]]
    %s61 = sld [smem:[#allocation5]]
    %s62 = smul.u32 32, %s60
    %s63 = smul.u32 2, %s61
    %p65 = scmp.eq.s32.totalorder 0, 0
    // Predicated region
    $region10: #{_gram_upper_device.1} parent=1 // pred_check
      %p66 = pneg %p65
    $region11: #{_gram_upper_device.1} parent=1 // pred_check_branch
      %68 = sbr.rel (%p66) target = $region13
    $region12: #{_gram_upper_device.1} parent=1 // pred_region
      %69 = vst [vmem:[#allocation2] sm:$0xff] 0.0
      %70 = vst [vmem:[#allocation2 + $0x8] sm:$0xff] 0.0
      %71 = vst [vmem:[#allocation2 + $0x10] sm:$0xff] 0.0
      %72 = vst [vmem:[#allocation2 + $0x18] sm:$0xff] 0.0
      %73 = vst [vmem:[#allocation2 + $0x20] sm:$0xff] 0.0
      %74 = vst [vmem:[#allocation2 + $0x28] sm:$0xff] 0.0
      %75 = vst [vmem:[#allocation2 + $0x30] sm:$0xff] 0.0
      %76 = vst [vmem:[#allocation2 + $0x38] sm:$0xff] 0.0
      %77 = vst [vmem:[#allocation2 + $0x40] sm:$0xff] 0.0
      %78 = vst [vmem:[#allocation2 + $0x48] sm:$0xff] 0.0
      %79 = vst [vmem:[#allocation2 + $0x50] sm:$0xff] 0.0
      %80 = vst [vmem:[#allocation2 + $0x58] sm:$0xff] 0.0
      %81 = vst [vmem:[#allocation2 + $0x60] sm:$0xff] 0.0
      %82 = vst [vmem:[#allocation2 + $0x68] sm:$0xff] 0.0
      %83 = vst [vmem:[#allocation2 + $0x70] sm:$0xff] 0.0
      %84 = vst [vmem:[#allocation2 + $0x78] sm:$0xff] 0.0
      %85 = vst [vmem:[#allocation2 + $0x80] sm:$0xff] 0.0
      %86 = vst [vmem:[#allocation2 + $0x88] sm:$0xff] 0.0
      %87 = vst [vmem:[#allocation2 + $0x90] sm:$0xff] 0.0
      %88 = vst [vmem:[#allocation2 + $0x98] sm:$0xff] 0.0
      %89 = vst [vmem:[#allocation2 + $0xa0] sm:$0xff] 0.0
      %90 = vst [vmem:[#allocation2 + $0xa8] sm:$0xff] 0.0
      %91 = vst [vmem:[#allocation2 + $0xb0] sm:$0xff] 0.0
      %92 = vst [vmem:[#allocation2 + $0xb8] sm:$0xff] 0.0
      %93 = vst [vmem:[#allocation2 + $0xc0] sm:$0xff] 0.0
      %94 = vst [vmem:[#allocation2 + $0xc8] sm:$0xff] 0.0
      %95 = vst [vmem:[#allocation2 + $0xd0] sm:$0xff] 0.0
      %96 = vst [vmem:[#allocation2 + $0xd8] sm:$0xff] 0.0
      %97 = vst [vmem:[#allocation2 + $0xe0] sm:$0xff] 0.0
      %98 = vst [vmem:[#allocation2 + $0xe8] sm:$0xff] 0.0
      %99 = vst [vmem:[#allocation2 + $0xf0] sm:$0xff] 0.0
      %100 = vst [vmem:[#allocation2 + $0xf8] sm:$0xff] 0.0
      %101 = vst [vmem:[#allocation2 + $0x100] sm:$0xff] 0.0
      %102 = vst [vmem:[#allocation2 + $0x108] sm:$0xff] 0.0
      %103 = vst [vmem:[#allocation2 + $0x110] sm:$0xff] 0.0
      %104 = vst [vmem:[#allocation2 + $0x118] sm:$0xff] 0.0
      %105 = vst [vmem:[#allocation2 + $0x120] sm:$0xff] 0.0
      %106 = vst [vmem:[#allocation2 + $0x128] sm:$0xff] 0.0
      %107 = vst [vmem:[#allocation2 + $0x130] sm:$0xff] 0.0
      %108 = vst [vmem:[#allocation2 + $0x138] sm:$0xff] 0.0
      %109 = vst [vmem:[#allocation2 + $0x140] sm:$0xff] 0.0
      %110 = vst [vmem:[#allocation2 + $0x148] sm:$0xff] 0.0
      %111 = vst [vmem:[#allocation2 + $0x150] sm:$0xff] 0.0
      %112 = vst [vmem:[#allocation2 + $0x158] sm:$0xff] 0.0
      %113 = vst [vmem:[#allocation2 + $0x160] sm:$0xff] 0.0
      %114 = vst [vmem:[#allocation2 + $0x168] sm:$0xff] 0.0
      %115 = vst [vmem:[#allocation2 + $0x170] sm:$0xff] 0.0
      %116 = vst [vmem:[#allocation2 + $0x178] sm:$0xff] 0.0
      %117 = vst [vmem:[#allocation2 + $0x180] sm:$0xff] 0.0
      %118 = vst [vmem:[#allocation2 + $0x188] sm:$0xff] 0.0
      %119 = vst [vmem:[#allocation2 + $0x190] sm:$0xff] 0.0
      %120 = vst [vmem:[#allocation2 + $0x198] sm:$0xff] 0.0
      %121 = vst [vmem:[#allocation2 + $0x1a0] sm:$0xff] 0.0
      %122 = vst [vmem:[#allocation2 + $0x1a8] sm:$0xff] 0.0
      %123 = vst [vmem:[#allocation2 + $0x1b0] sm:$0xff] 0.0
      %124 = vst [vmem:[#allocation2 + $0x1b8] sm:$0xff] 0.0
      %125 = vst [vmem:[#allocation2 + $0x1c0] sm:$0xff] 0.0
      %126 = vst [vmem:[#allocation2 + $0x1c8] sm:$0xff] 0.0
      %127 = vst [vmem:[#allocation2 + $0x1d0] sm:$0xff] 0.0
      %128 = vst [vmem:[#allocation2 + $0x1d8] sm:$0xff] 0.0
      %129 = vst [vmem:[#allocation2 + $0x1e0] sm:$0xff] 0.0
      %130 = vst [vmem:[#allocation2 + $0x1e8] sm:$0xff] 0.0
      %131 = vst [vmem:[#allocation2 + $0x1f0] sm:$0xff] 0.0
      %132 = vst [vmem:[#allocation2 + $0x1f8] sm:$0xff] 0.0
    $region13: #{_gram_upper_device.1} parent=1 // pred_fallthru
      _
    %v133 = vld [vmem:[#allocation2] sm:$0xff]
    %v134 = vld [vmem:[#allocation2 + $0x8] sm:$0xff]
    %v135 = vld [vmem:[#allocation2 + $0x10] sm:$0xff]
    %v136 = vld [vmem:[#allocation2 + $0x18] sm:$0xff]
    %v137 = vld [vmem:[#allocation2 + $0x20] sm:$0xff]
    %v138 = vld [vmem:[#allocation2 + $0x28] sm:$0xff]
    %v139 = vld [vmem:[#allocation2 + $0x30] sm:$0xff]
    %v140 = vld [vmem:[#allocation2 + $0x38] sm:$0xff]
    %v141 = vld [vmem:[#allocation2 + $0x40] sm:$0xff]
    %v142 = vld [vmem:[#allocation2 + $0x48] sm:$0xff]
    %v143 = vld [vmem:[#allocation2 + $0x50] sm:$0xff]
    %v144 = vld [vmem:[#allocation2 + $0x58] sm:$0xff]
    %v145 = vld [vmem:[#allocation2 + $0x60] sm:$0xff]
    %v146 = vld [vmem:[#allocation2 + $0x68] sm:$0xff]
    %v147 = vld [vmem:[#allocation2 + $0x70] sm:$0xff]
    %v148 = vld [vmem:[#allocation2 + $0x78] sm:$0xff]
    %v149 = vld [vmem:[#allocation2 + $0x80] sm:$0xff]
    %v150 = vld [vmem:[#allocation2 + $0x88] sm:$0xff]
    %v151 = vld [vmem:[#allocation2 + $0x90] sm:$0xff]
    %v152 = vld [vmem:[#allocation2 + $0x98] sm:$0xff]
    %v153 = vld [vmem:[#allocation2 + $0xa0] sm:$0xff]
    %v154 = vld [vmem:[#allocation2 + $0xa8] sm:$0xff]
    %v155 = vld [vmem:[#allocation2 + $0xb0] sm:$0xff]
    %v156 = vld [vmem:[#allocation2 + $0xb8] sm:$0xff]
    %v157 = vld [vmem:[#allocation2 + $0xc0] sm:$0xff]
    %v158 = vld [vmem:[#allocation2 + $0xc8] sm:$0xff]
    %v159 = vld [vmem:[#allocation2 + $0xd0] sm:$0xff]
    %v160 = vld [vmem:[#allocation2 + $0xd8] sm:$0xff]
    %v161 = vld [vmem:[#allocation2 + $0xe0] sm:$0xff]
    %v162 = vld [vmem:[#allocation2 + $0xe8] sm:$0xff]
    %v163 = vld [vmem:[#allocation2 + $0xf0] sm:$0xff]
    %v164 = vld [vmem:[#allocation2 + $0xf8] sm:$0xff]
    %v165 = vld [vmem:[#allocation2 + $0x100] sm:$0xff]
    %v166 = vld [vmem:[#allocation2 + $0x108] sm:$0xff]
    %v167 = vld [vmem:[#allocation2 + $0x110] sm:$0xff]
    %v168 = vld [vmem:[#allocation2 + $0x118] sm:$0xff]
    %v169 = vld [vmem:[#allocation2 + $0x120] sm:$0xff]
    %v170 = vld [vmem:[#allocation2 + $0x128] sm:$0xff]
    %v171 = vld [vmem:[#allocation2 + $0x130] sm:$0xff]
    %v172 = vld [vmem:[#allocation2 + $0x138] sm:$0xff]
    %v173 = vld [vmem:[#allocation2 + $0x140] sm:$0xff]
    %v174 = vld [vmem:[#allocation2 + $0x148] sm:$0xff]
    %v175 = vld [vmem:[#allocation2 + $0x150] sm:$0xff]
    %v176 = vld [vmem:[#allocation2 + $0x158] sm:$0xff]
    %v177 = vld [vmem:[#allocation2 + $0x160] sm:$0xff]
    %v178 = vld [vmem:[#allocation2 + $0x168] sm:$0xff]
    %v179 = vld [vmem:[#allocation2 + $0x170] sm:$0xff]
    %v180 = vld [vmem:[#allocation2 + $0x178] sm:$0xff]
    %v181 = vld [vmem:[#allocation2 + $0x180] sm:$0xff]
    %v182 = vld [vmem:[#allocation2 + $0x188] sm:$0xff]
    %v183 = vld [vmem:[#allocation2 + $0x190] sm:$0xff]
    %v184 = vld [vmem:[#allocation2 + $0x198] sm:$0xff]
    %v185 = vld [vmem:[#allocation2 + $0x1a0] sm:$0xff]
    %v186 = vld [vmem:[#allocation2 + $0x1a8] sm:$0xff]
    %v187 = vld [vmem:[#allocation2 + $0x1b0] sm:$0xff]
    %v188 = vld [vmem:[#allocation2 + $0x1b8] sm:$0xff]
    %v189 = vld [vmem:[#allocation2 + $0x1c0] sm:$0xff]
    %v190 = vld [vmem:[#allocation2 + $0x1c8] sm:$0xff]
    %v191 = vld [vmem:[#allocation2 + $0x1d0] sm:$0xff]
    %v192 = vld [vmem:[#allocation2 + $0x1d8] sm:$0xff]
    %v193 = vld [vmem:[#allocation2 + $0x1e0] sm:$0xff]
    %v194 = vld [vmem:[#allocation2 + $0x1e8] sm:$0xff]
    %v195 = vld [vmem:[#allocation2 + $0x1f0] sm:$0xff]
    %v196 = vld [vmem:[#allocation2 + $0x1f8] sm:$0xff]
    %v197 = vld [vmem:[%s49] sm:$0xff]
    %v198 = vld [vmem:[%s49 + $0x8] sm:$0xff]
    %v199 = vld [vmem:[%s49 + $0x10] sm:$0xff]
    %v200 = vld [vmem:[%s49 + $0x18] sm:$0xff]
    %v201 = vld [vmem:[%s57] sm:$0xff]
    %v202 = vld [vmem:[%s57 + $0x8] sm:$0xff]
    %v203 = vld [vmem:[%s57 + $0x10] sm:$0xff]
    %v204 = vld [vmem:[%s57 + $0x18] sm:$0xff]
    %v209 = vunpack.c.l.b16 %v197
    %v210 = vunpack.c.h.b16 %v197
    %v211 = vunpack.c.l.b16 %v198
    %v212 = vunpack.c.h.b16 %v198
    %v213 = vunpack.c.l.b16 %v199
    %v214 = vunpack.c.h.b16 %v199
    %v215 = vunpack.c.l.b16 %v200
    %v216 = vunpack.c.h.b16 %v200
    %v217 = vpack.c.b16 %v211, %v209
    %v218 = vpack.c.b16 %v212, %v210
    %v219 = vpack.c.b16 %v215, %v213
    %v220 = vpack.c.b16 %v216, %v214
    %225 = vxpose.xlu0.c.b16.start [1/8] %v217, 128
    %226 = vxpose.xlu0.c.b16.cont [2/8] %v219, 128
    %227 = vxpose.xlu0.c.b16.cont [3/8] 0, 128
    %228 = vxpose.xlu0.c.b16.cont [4/8] 0, 128
    %229 = vxpose.xlu0.c.b16.cont [5/8] 0, 128
    %230 = vxpose.xlu0.c.b16.cont [6/8] 0, 128
    %231 = vxpose.xlu0.c.b16.cont [7/8] 0, 128
    %232 = vxpose.xlu0.c.b16.end [8/8] 0, 128
    %v233 = vpop.trf.xlu0
    %v234 = vpop.trf.xlu0
    %v235 = vpop.trf.xlu0
    %v236 = vpop.trf.xlu0
    %v237 = vpop.trf.xlu0
    %v238 = vpop.trf.xlu0
    %v239 = vpop.trf.xlu0
    %v240 = vpop.trf.xlu0
    %241 = vxpose.xlu0.c.b16.start [1/8] %v218, 128
    %242 = vxpose.xlu0.c.b16.cont [2/8] %v220, 128
    %243 = vxpose.xlu0.c.b16.cont [3/8] 0, 128
    %244 = vxpose.xlu0.c.b16.cont [4/8] 0, 128
    %245 = vxpose.xlu0.c.b16.cont [5/8] 0, 128
    %246 = vxpose.xlu0.c.b16.cont [6/8] 0, 128
    %247 = vxpose.xlu0.c.b16.cont [7/8] 0, 128
    %248 = vxpose.xlu0.c.b16.end [8/8] 0, 128
    %v249 = vpop.trf.xlu0
    %v250 = vpop.trf.xlu0
    %v251 = vpop.trf.xlu0
    %v252 = vpop.trf.xlu0
    %v253 = vpop.trf.xlu0
    %v254 = vpop.trf.xlu0
    %v255 = vpop.trf.xlu0
    %v256 = vpop.trf.xlu0
    %v261 = vunpack.c.l.b16 %v201
    %v262 = vunpack.c.h.b16 %v201
    %v263 = vunpack.c.l.b16 %v202
    %v264 = vunpack.c.h.b16 %v202
    %v265 = vunpack.c.l.b16 %v203
    %v266 = vunpack.c.h.b16 %v203
    %v267 = vunpack.c.l.b16 %v204
    %v268 = vunpack.c.h.b16 %v204
    %v269 = vpack.c.b16 %v263, %v261
    %v270 = vpack.c.b16 %v264, %v262
    %v271 = vpack.c.b16 %v267, %v265
    %v272 = vpack.c.b16 %v268, %v266
    %vm277 = vcmask 261120
    %v279 = vsel %vm277, %v233, 0
    %v282 = vsel %vm277, %v234, 0
    %v285 = vsel %vm277, %v235, 0
    %v288 = vsel %vm277, %v236, 0
    %v291 = vsel %vm277, %v237, 0
    %v294 = vsel %vm277, %v238, 0
    %v297 = vsel %vm277, %v239, 0
    %v300 = vsel %vm277, %v240, 0
    %v303 = vsel %vm277, %v249, 0
    %v306 = vsel %vm277, %v250, 0
    %v309 = vsel %vm277, %v251, 0
    %v312 = vsel %vm277, %v252, 0
    %v315 = vsel %vm277, %v253, 0
    %v318 = vsel %vm277, %v254, 0
    %v321 = vsel %vm277, %v255, 0
    %v324 = vsel %vm277, %v256, 0
    %326 = vmatprep.subr.bf16.mxu0 0
    %327 = vmatpush1.bf16.msra.mxu0 0
    %328 = vmatprep.subr.bf16.mxu0 0
    %329 = vmatpush1.bf16.msra.mxu0 0
    %330 = vmatprep.subr.bf16.mxu0 0
    %331 = vmatpush1.bf16.msra.mxu0 0
    %332 = vmatprep.subr.bf16.mxu0 0
    %333 = vmatpush1.bf16.msra.mxu0 0
    %334 = vmatprep.subr.bf16.mxu0 0
    %335 = vmatpush1.bf16.msra.mxu0 0
    %336 = vmatprep.subr.bf16.mxu0 0
    %337 = vmatpush1.bf16.msra.mxu0 0
    %338 = vmatprep.subr.bf16.mxu0 %v272
    %339 = vmatpush1.bf16.msra.mxu0 %v271
    %340 = vmatprep.subr.bf16.mxu0 %v270
    %341 = vmatpush1.bf16.msra.mxu0 %v269
    %342 = vmatprep.subr.bf16.mxu0 0
    %343 = vmatpush2.bf16.msra.mxu0 0
    %344 = vmatprep.subr.bf16.mxu0 0
    %345 = vmatpush2.bf16.msra.mxu0 0
    %346 = vmatprep.subr.bf16.mxu0 0
    %347 = vmatpush2.bf16.msra.mxu0 0
    %348 = vmatprep.subr.bf16.mxu0 0
    %349 = vmatpush2.bf16.msra.mxu0 0
    %350 = vmatprep.subr.bf16.mxu0 0
    %351 = vmatpush2.bf16.msra.mxu0 0
    %352 = vmatprep.subr.bf16.mxu0 0
    %353 = vmatpush2.bf16.msra.mxu0 0
    %354 = vmatprep.subr.bf16.mxu0 0
    %355 = vmatpush2.bf16.msra.mxu0 0
    %356 = vmatprep.subr.bf16.mxu0 0
    %357 = vmatpush2.bf16.msra.mxu0 0
    %358 = vmatprep.mubr.bf16.mxu0 0
    %359 = vmatmul.mubr.bf16.gmra.mxu0 %v279
    %v360 = vpop.f32.mrf.mxu0
    %v361 = vadd.f32 0.0, %v360
    %v362 = vpop.f32.mrf.mxu0
    %v363 = vadd.f32 0.0, %v362
    %v364 = vpop.f32.mrf.mxu0
    %v365 = vadd.f32 0.0, %v364
    %v366 = vpop.f32.mrf.mxu0
    %v367 = vadd.f32 0.0, %v366
    %368 = vmatprep.mubr.bf16.mxu0 0
    %369 = vmatmul.mubr.bf16.gmra.mxu0 %v282
    %v370 = vpop.f32.mrf.mxu0
    %v371 = vadd.f32 0.0, %v370
    %v372 = vpop.f32.mrf.mxu0
    %v373 = vadd.f32 0.0, %v372
    %v374 = vpop.f32.mrf.mxu0
    %v375 = vadd.f32 0.0, %v374
    %v376 = vpop.f32.mrf.mxu0
    %v377 = vadd.f32 0.0, %v376
    %378 = vmatprep.mubr.bf16.mxu0 0
    %379 = vmatmul.mubr.bf16.gmra.mxu0 %v285
    %v380 = vpop.f32.mrf.mxu0
    %v381 = vadd.f32 0.0, %v380
    %v382 = vpop.f32.mrf.mxu0
    %v383 = vadd.f32 0.0, %v382
    %v384 = vpop.f32.mrf.mxu0
    %v385 = vadd.f32 0.0, %v384
    %v386 = vpop.f32.mrf.mxu0
    %v387 = vadd.f32 0.0, %v386
    %388 = vmatprep.mubr.bf16.mxu0 0
    %389 = vmatmul.mubr.bf16.gmra.mxu0 %v288
    %v390 = vpop.f32.mrf.mxu0
    %v391 = vadd.f32 0.0, %v390
    %v392 = vpop.f32.mrf.mxu0
    %v393 = vadd.f32 0.0, %v392
    %v394 = vpop.f32.mrf.mxu0
    %v395 = vadd.f32 0.0, %v394
    %v396 = vpop.f32.mrf.mxu0
    %v397 = vadd.f32 0.0, %v396
    %398 = vmatprep.mubr.bf16.mxu0 0
    %399 = vmatmul.mubr.bf16.gmra.mxu0 %v291
    %v400 = vpop.f32.mrf.mxu0
    %v401 = vadd.f32 0.0, %v400
    %v402 = vpop.f32.mrf.mxu0
    %v403 = vadd.f32 0.0, %v402
    %v404 = vpop.f32.mrf.mxu0
    %v405 = vadd.f32 0.0, %v404
    %v406 = vpop.f32.mrf.mxu0
    %v407 = vadd.f32 0.0, %v406
    %408 = vmatprep.mubr.bf16.mxu0 0
    %409 = vmatmul.mubr.bf16.gmra.mxu0 %v294
    %v410 = vpop.f32.mrf.mxu0
    %v411 = vadd.f32 0.0, %v410
    %v412 = vpop.f32.mrf.mxu0
    %v413 = vadd.f32 0.0, %v412
    %v414 = vpop.f32.mrf.mxu0
    %v415 = vadd.f32 0.0, %v414
    %v416 = vpop.f32.mrf.mxu0
    %v417 = vadd.f32 0.0, %v416
    %418 = vmatprep.mubr.bf16.mxu0 0
    %419 = vmatmul.mubr.bf16.gmra.mxu0 %v297
    %v420 = vpop.f32.mrf.mxu0
    %v421 = vadd.f32 0.0, %v420
    %v422 = vpop.f32.mrf.mxu0
    %v423 = vadd.f32 0.0, %v422
    %v424 = vpop.f32.mrf.mxu0
    %v425 = vadd.f32 0.0, %v424
    %v426 = vpop.f32.mrf.mxu0
    %v427 = vadd.f32 0.0, %v426
    %428 = vmatprep.mubr.bf16.mxu0 0
    %429 = vmatmul.mubr.bf16.gmra.mxu0 %v300
    %v430 = vpop.f32.mrf.mxu0
    %v431 = vadd.f32 0.0, %v430
    %v432 = vpop.f32.mrf.mxu0
    %v433 = vadd.f32 0.0, %v432
    %v434 = vpop.f32.mrf.mxu0
    %v435 = vadd.f32 0.0, %v434
    %v436 = vpop.f32.mrf.mxu0
    %v437 = vadd.f32 0.0, %v436
    %438 = vmatprep.mubr.bf16.mxu0 0
    %439 = vmatmul.mubr.bf16.gmra.mxu0 %v303
    %v440 = vpop.f32.mrf.mxu0
    %v441 = vadd.f32 0.0, %v440
    %v442 = vpop.f32.mrf.mxu0
    %v443 = vadd.f32 0.0, %v442
    %v444 = vpop.f32.mrf.mxu0
    %v445 = vadd.f32 0.0, %v444
    %v446 = vpop.f32.mrf.mxu0
    %v447 = vadd.f32 0.0, %v446
    %448 = vmatprep.mubr.bf16.mxu0 0
    %449 = vmatmul.mubr.bf16.gmra.mxu0 %v306
    %v450 = vpop.f32.mrf.mxu0
    %v451 = vadd.f32 0.0, %v450
    %v452 = vpop.f32.mrf.mxu0
    %v453 = vadd.f32 0.0, %v452
    %v454 = vpop.f32.mrf.mxu0
    %v455 = vadd.f32 0.0, %v454
    %v456 = vpop.f32.mrf.mxu0
    %v457 = vadd.f32 0.0, %v456
    %458 = vmatprep.mubr.bf16.mxu0 0
    %459 = vmatmul.mubr.bf16.gmra.mxu0 %v309
    %v460 = vpop.f32.mrf.mxu0
    %v461 = vadd.f32 0.0, %v460
    %v462 = vpop.f32.mrf.mxu0
    %v463 = vadd.f32 0.0, %v462
    %v464 = vpop.f32.mrf.mxu0
    %v465 = vadd.f32 0.0, %v464
    %v466 = vpop.f32.mrf.mxu0
    %v467 = vadd.f32 0.0, %v466
    %468 = vmatprep.mubr.bf16.mxu0 0
    %469 = vmatmul.mubr.bf16.gmra.mxu0 %v312
    %v470 = vpop.f32.mrf.mxu0
    %v471 = vadd.f32 0.0, %v470
    %v472 = vpop.f32.mrf.mxu0
    %v473 = vadd.f32 0.0, %v472
    %v474 = vpop.f32.mrf.mxu0
    %v475 = vadd.f32 0.0, %v474
    %v476 = vpop.f32.mrf.mxu0
    %v477 = vadd.f32 0.0, %v476
    %478 = vmatprep.mubr.bf16.mxu0 0
    %479 = vmatmul.mubr.bf16.gmra.mxu0 %v315
    %v480 = vpop.f32.mrf.mxu0
    %v481 = vadd.f32 0.0, %v480
    %v482 = vpop.f32.mrf.mxu0
    %v483 = vadd.f32 0.0, %v482
    %v484 = vpop.f32.mrf.mxu0
    %v485 = vadd.f32 0.0, %v484
    %v486 = vpop.f32.mrf.mxu0
    %v487 = vadd.f32 0.0, %v486
    %488 = vmatprep.mubr.bf16.mxu0 0
    %489 = vmatmul.mubr.bf16.gmra.mxu0 %v318
    %v490 = vpop.f32.mrf.mxu0
    %v491 = vadd.f32 0.0, %v490
    %v492 = vpop.f32.mrf.mxu0
    %v493 = vadd.f32 0.0, %v492
    %v494 = vpop.f32.mrf.mxu0
    %v495 = vadd.f32 0.0, %v494
    %v496 = vpop.f32.mrf.mxu0
    %v497 = vadd.f32 0.0, %v496
    %498 = vmatprep.mubr.bf16.mxu0 0
    %499 = vmatmul.mubr.bf16.gmra.mxu0 %v321
    %v500 = vpop.f32.mrf.mxu0
    %v501 = vadd.f32 0.0, %v500
    %v502 = vpop.f32.mrf.mxu0
    %v503 = vadd.f32 0.0, %v502
    %v504 = vpop.f32.mrf.mxu0
    %v505 = vadd.f32 0.0, %v504
    %v506 = vpop.f32.mrf.mxu0
    %v507 = vadd.f32 0.0, %v506
    %508 = vmatprep.mubr.bf16.mxu0 0
    %509 = vmatmul.mubr.bf16.gmra.mxu0 %v324
    %v510 = vpop.f32.mrf.mxu0
    %v511 = vadd.f32 0.0, %v510
    %v512 = vpop.f32.mrf.mxu0
    %v513 = vadd.f32 0.0, %v512
    %v514 = vpop.f32.mrf.mxu0
    %v515 = vadd.f32 0.0, %v514
    %v516 = vpop.f32.mrf.mxu0
    %v517 = vadd.f32 0.0, %v516
    %518 = vdwg.mxu0
    %v519 = vadd.f32 %v133, %v361
    %v520 = vadd.f32 %v134, %v363
    %v521 = vadd.f32 %v135, %v365
    %v522 = vadd.f32 %v136, %v367
    %v523 = vadd.f32 %v137, %v371
    %v524 = vadd.f32 %v138, %v373
    %v525 = vadd.f32 %v139, %v375
    %v526 = vadd.f32 %v140, %v377
    %v527 = vadd.f32 %v141, %v381
    %v528 = vadd.f32 %v142, %v383
    %v529 = vadd.f32 %v143, %v385
    %v530 = vadd.f32 %v144, %v387
    %v531 = vadd.f32 %v145, %v391
    %v532 = vadd.f32 %v146, %v393
    %v533 = vadd.f32 %v147, %v395
    %v534 = vadd.f32 %v148, %v397
    %v535 = vadd.f32 %v149, %v401
    %v536 = vadd.f32 %v150, %v403
    %v537 = vadd.f32 %v151, %v405
    %v538 = vadd.f32 %v152, %v407
    %v539 = vadd.f32 %v153, %v411
    %v540 = vadd.f32 %v154, %v413
    %v541 = vadd.f32 %v155, %v415
    %v542 = vadd.f32 %v156, %v417
    %v543 = vadd.f32 %v157, %v421
    %v544 = vadd.f32 %v158, %v423
    %v545 = vadd.f32 %v159, %v425
    %v546 = vadd.f32 %v160, %v427
    %v547 = vadd.f32 %v161, %v431
    %v548 = vadd.f32 %v162, %v433
    %v549 = vadd.f32 %v163, %v435
    %v550 = vadd.f32 %v164, %v437
    %v551 = vadd.f32 %v165, %v441
    %v552 = vadd.f32 %v166, %v443
    %v553 = vadd.f32 %v167, %v445
    %v554 = vadd.f32 %v168, %v447
    %v555 = vadd.f32 %v169, %v451
    %v556 = vadd.f32 %v170, %v453
    %v557 = vadd.f32 %v171, %v455
    %v558 = vadd.f32 %v172, %v457
    %v559 = vadd.f32 %v173, %v461
    %v560 = vadd.f32 %v174, %v463
    %v561 = vadd.f32 %v175, %v465
    %v562 = vadd.f32 %v176, %v467
    %v563 = vadd.f32 %v177, %v471
    %v564 = vadd.f32 %v178, %v473
    %v565 = vadd.f32 %v179, %v475
    %v566 = vadd.f32 %v180, %v477
    %v567 = vadd.f32 %v181, %v481
    %v568 = vadd.f32 %v182, %v483
    %v569 = vadd.f32 %v183, %v485
    %v570 = vadd.f32 %v184, %v487
    %v571 = vadd.f32 %v185, %v491
    %v572 = vadd.f32 %v186, %v493
    %v573 = vadd.f32 %v187, %v495
    %v574 = vadd.f32 %v188, %v497
    %v575 = vadd.f32 %v189, %v501
    %v576 = vadd.f32 %v190, %v503
    %v577 = vadd.f32 %v191, %v505
    %v578 = vadd.f32 %v192, %v507
    %v579 = vadd.f32 %v193, %v511
    %v580 = vadd.f32 %v194, %v513
    %v581 = vadd.f32 %v195, %v515
    %v582 = vadd.f32 %v196, %v517
    %583 = vst [vmem:[#allocation2] sm:$0xff] %v519
    %584 = vst [vmem:[#allocation2 + $0x8] sm:$0xff] %v520
    %585 = vst [vmem:[#allocation2 + $0x10] sm:$0xff] %v521
    %586 = vst [vmem:[#allocation2 + $0x18] sm:$0xff] %v522
    %587 = vst [vmem:[#allocation2 + $0x20] sm:$0xff] %v523
    %588 = vst [vmem:[#allocation2 + $0x28] sm:$0xff] %v524
    %589 = vst [vmem:[#allocation2 + $0x30] sm:$0xff] %v525
    %590 = vst [vmem:[#allocation2 + $0x38] sm:$0xff] %v526
    %591 = vst [vmem:[#allocation2 + $0x40] sm:$0xff] %v527
    %592 = vst [vmem:[#allocation2 + $0x48] sm:$0xff] %v528
    %593 = vst [vmem:[#allocation2 + $0x50] sm:$0xff] %v529
    %594 = vst [vmem:[#allocation2 + $0x58] sm:$0xff] %v530
    %595 = vst [vmem:[#allocation2 + $0x60] sm:$0xff] %v531
    %596 = vst [vmem:[#allocation2 + $0x68] sm:$0xff] %v532
    %597 = vst [vmem:[#allocation2 + $0x70] sm:$0xff] %v533
    %598 = vst [vmem:[#allocation2 + $0x78] sm:$0xff] %v534
    %599 = vst [vmem:[#allocation2 + $0x80] sm:$0xff] %v535
    %600 = vst [vmem:[#allocation2 + $0x88] sm:$0xff] %v536
    %601 = vst [vmem:[#allocation2 + $0x90] sm:$0xff] %v537
    %602 = vst [vmem:[#allocation2 + $0x98] sm:$0xff] %v538
    %603 = vst [vmem:[#allocation2 + $0xa0] sm:$0xff] %v539
    %604 = vst [vmem:[#allocation2 + $0xa8] sm:$0xff] %v540
    %605 = vst [vmem:[#allocation2 + $0xb0] sm:$0xff] %v541
    %606 = vst [vmem:[#allocation2 + $0xb8] sm:$0xff] %v542
    %607 = vst [vmem:[#allocation2 + $0xc0] sm:$0xff] %v543
    %608 = vst [vmem:[#allocation2 + $0xc8] sm:$0xff] %v544
    %609 = vst [vmem:[#allocation2 + $0xd0] sm:$0xff] %v545
    %610 = vst [vmem:[#allocation2 + $0xd8] sm:$0xff] %v546
    %611 = vst [vmem:[#allocation2 + $0xe0] sm:$0xff] %v547
    %612 = vst [vmem:[#allocation2 + $0xe8] sm:$0xff] %v548
    %613 = vst [vmem:[#allocation2 + $0xf0] sm:$0xff] %v549
    %614 = vst [vmem:[#allocation2 + $0xf8] sm:$0xff] %v550
    %615 = vst [vmem:[#allocation2 + $0x100] sm:$0xff] %v551
    %616 = vst [vmem:[#allocation2 + $0x108] sm:$0xff] %v552
    %617 = vst [vmem:[#allocation2 + $0x110] sm:$0xff] %v553
    %618 = vst [vmem:[#allocation2 + $0x118] sm:$0xff] %v554
    %619 = vst [vmem:[#allocation2 + $0x120] sm:$0xff] %v555
    %620 = vst [vmem:[#allocation2 + $0x128] sm:$0xff] %v556
    %621 = vst [vmem:[#allocation2 + $0x130] sm:$0xff] %v557
    %622 = vst [vmem:[#allocation2 + $0x138] sm:$0xff] %v558
    %623 = vst [vmem:[#allocation2 + $0x140] sm:$0xff] %v559
    %624 = vst [vmem:[#allocation2 + $0x148] sm:$0xff] %v560
    %625 = vst [vmem:[#allocation2 + $0x150] sm:$0xff] %v561
    %626 = vst [vmem:[#allocation2 + $0x158] sm:$0xff] %v562
    %627 = vst [vmem:[#allocation2 + $0x160] sm:$0xff] %v563
    %628 = vst [vmem:[#allocation2 + $0x168] sm:$0xff] %v564
    %629 = vst [vmem:[#allocation2 + $0x170] sm:$0xff] %v565
    %630 = vst [vmem:[#allocation2 + $0x178] sm:$0xff] %v566
    %631 = vst [vmem:[#allocation2 + $0x180] sm:$0xff] %v567
    %632 = vst [vmem:[#allocation2 + $0x188] sm:$0xff] %v568
    %633 = vst [vmem:[#allocation2 + $0x190] sm:$0xff] %v569
    %634 = vst [vmem:[#allocation2 + $0x198] sm:$0xff] %v570
    %635 = vst [vmem:[#allocation2 + $0x1a0] sm:$0xff] %v571
    %636 = vst [vmem:[#allocation2 + $0x1a8] sm:$0xff] %v572
    %637 = vst [vmem:[#allocation2 + $0x1b0] sm:$0xff] %v573
    %638 = vst [vmem:[#allocation2 + $0x1b8] sm:$0xff] %v574
    %639 = vst [vmem:[#allocation2 + $0x1c0] sm:$0xff] %v575
    %640 = vst [vmem:[#allocation2 + $0x1c8] sm:$0xff] %v576
    %641 = vst [vmem:[#allocation2 + $0x1d0] sm:$0xff] %v577
    %642 = vst [vmem:[#allocation2 + $0x1d8] sm:$0xff] %v578
    %643 = vst [vmem:[#allocation2 + $0x1e0] sm:$0xff] %v579
    %644 = vst [vmem:[#allocation2 + $0x1e8] sm:$0xff] %v580
    %645 = vst [vmem:[#allocation2 + $0x1f0] sm:$0xff] %v581
    %646 = vst [vmem:[#allocation2 + $0x1f8] sm:$0xff] %v582
    // Predicated region
    $region14: #{_gram_upper_device.1} parent=1 // pred_check
      %p647 = pneg %p65
    $region15: #{_gram_upper_device.1} parent=1 // pred_check_branch
      %649 = sbr.rel (%p647) target = $region17
    $region16: #{_gram_upper_device.1} parent=1 // pred_region
      %v650 = vld [vmem:[#allocation2] sm:$0xff]
      %v651 = vld [vmem:[#allocation2 + $0x8] sm:$0xff]
      %v652 = vld [vmem:[#allocation2 + $0x10] sm:$0xff]
      %v653 = vld [vmem:[#allocation2 + $0x18] sm:$0xff]
      %v654 = vld [vmem:[#allocation2 + $0x20] sm:$0xff]
      %v655 = vld [vmem:[#allocation2 + $0x28] sm:$0xff]
      %v656 = vld [vmem:[#allocation2 + $0x30] sm:$0xff]
      %v657 = vld [vmem:[#allocation2 + $0x38] sm:$0xff]
      %v658 = vld [vmem:[#allocation2 + $0x40] sm:$0xff]
      %v659 = vld [vmem:[#allocation2 + $0x48] sm:$0xff]
      %v660 = vld [vmem:[#allocation2 + $0x50] sm:$0xff]
      %v661 = vld [vmem:[#allocation2 + $0x58] sm:$0xff]
      %v662 = vld [vmem:[#allocation2 + $0x60] sm:$0xff]
      %v663 = vld [vmem:[#allocation2 + $0x68] sm:$0xff]
      %v664 = vld [vmem:[#allocation2 + $0x70] sm:$0xff]
      %v665 = vld [vmem:[#allocation2 + $0x78] sm:$0xff]
      %v666 = vld [vmem:[#allocation2 + $0x80] sm:$0xff]
      %v667 = vld [vmem:[#allocation2 + $0x88] sm:$0xff]
      %v668 = vld [vmem:[#allocation2 + $0x90] sm:$0xff]
      %v669 = vld [vmem:[#allocation2 + $0x98] sm:$0xff]
      %v670 = vld [vmem:[#allocation2 + $0xa0] sm:$0xff]
      %v671 = vld [vmem:[#allocation2 + $0xa8] sm:$0xff]
      %v672 = vld [vmem:[#allocation2 + $0xb0] sm:$0xff]
      %v673 = vld [vmem:[#allocation2 + $0xb8] sm:$0xff]
      %v674 = vld [vmem:[#allocation2 + $0xc0] sm:$0xff]
      %v675 = vld [vmem:[#allocation2 + $0xc8] sm:$0xff]
      %v676 = vld [vmem:[#allocation2 + $0xd0] sm:$0xff]
      %v677 = vld [vmem:[#allocation2 + $0xd8] sm:$0xff]
      %v678 = vld [vmem:[#allocation2 + $0xe0] sm:$0xff]
      %v679 = vld [vmem:[#allocation2 + $0xe8] sm:$0xff]
      %v680 = vld [vmem:[#allocation2 + $0xf0] sm:$0xff]
      %v681 = vld [vmem:[#allocation2 + $0xf8] sm:$0xff]
      %v682 = vld [vmem:[#allocation2 + $0x100] sm:$0xff]
      %v683 = vld [vmem:[#allocation2 + $0x108] sm:$0xff]
      %v684 = vld [vmem:[#allocation2 + $0x110] sm:$0xff]
      %v685 = vld [vmem:[#allocation2 + $0x118] sm:$0xff]
      %v686 = vld [vmem:[#allocation2 + $0x120] sm:$0xff]
      %v687 = vld [vmem:[#allocation2 + $0x128] sm:$0xff]
      %v688 = vld [vmem:[#allocation2 + $0x130] sm:$0xff]
      %v689 = vld [vmem:[#allocation2 + $0x138] sm:$0xff]
      %v690 = vld [vmem:[#allocation2 + $0x140] sm:$0xff]
      %v691 = vld [vmem:[#allocation2 + $0x148] sm:$0xff]
      %v692 = vld [vmem:[#allocation2 + $0x150] sm:$0xff]
      %v693 = vld [vmem:[#allocation2 + $0x158] sm:$0xff]
      %v694 = vld [vmem:[#allocation2 + $0x160] sm:$0xff]
      %v695 = vld [vmem:[#allocation2 + $0x168] sm:$0xff]
      %v696 = vld [vmem:[#allocation2 + $0x170] sm:$0xff]
      %v697 = vld [vmem:[#allocation2 + $0x178] sm:$0xff]
      %v698 = vld [vmem:[#allocation2 + $0x180] sm:$0xff]
      %v699 = vld [vmem:[#allocation2 + $0x188] sm:$0xff]
      %v700 = vld [vmem:[#allocation2 + $0x190] sm:$0xff]
      %v701 = vld [vmem:[#allocation2 + $0x198] sm:$0xff]
      %v702 = vld [vmem:[#allocation2 + $0x1a0] sm:$0xff]
      %v703 = vld [vmem:[#allocation2 + $0x1a8] sm:$0xff]
      %v704 = vld [vmem:[#allocation2 + $0x1b0] sm:$0xff]
      %v705 = vld [vmem:[#allocation2 + $0x1b8] sm:$0xff]
      %v706 = vld [vmem:[#allocation2 + $0x1c0] sm:$0xff]
      %v707 = vld [vmem:[#allocation2 + $0x1c8] sm:$0xff]
      %v708 = vld [vmem:[#allocation2 + $0x1d0] sm:$0xff]
      %v709 = vld [vmem:[#allocation2 + $0x1d8] sm:$0xff]
      %v710 = vld [vmem:[#allocation2 + $0x1e0] sm:$0xff]
      %v711 = vld [vmem:[#allocation2 + $0x1e8] sm:$0xff]
      %v712 = vld [vmem:[#allocation2 + $0x1f0] sm:$0xff]
      %v713 = vld [vmem:[#allocation2 + $0x1f8] sm:$0xff]
      %v714 = vpack.c.bf16 %v652, %v650
      %v715 = vpack.c.bf16 %v653, %v651
      %v716 = vpack.c.bf16 %v656, %v654
      %v717 = vpack.c.bf16 %v657, %v655
      %v718 = vpack.c.bf16 %v660, %v658
      %v719 = vpack.c.bf16 %v661, %v659
      %v720 = vpack.c.bf16 %v664, %v662
      %v721 = vpack.c.bf16 %v665, %v663
      %v722 = vpack.c.bf16 %v668, %v666
      %v723 = vpack.c.bf16 %v669, %v667
      %v724 = vpack.c.bf16 %v672, %v670
      %v725 = vpack.c.bf16 %v673, %v671
      %v726 = vpack.c.bf16 %v676, %v674
      %v727 = vpack.c.bf16 %v677, %v675
      %v728 = vpack.c.bf16 %v680, %v678
      %v729 = vpack.c.bf16 %v681, %v679
      %v730 = vpack.c.bf16 %v684, %v682
      %v731 = vpack.c.bf16 %v685, %v683
      %v732 = vpack.c.bf16 %v688, %v686
      %v733 = vpack.c.bf16 %v689, %v687
      %v734 = vpack.c.bf16 %v692, %v690
      %v735 = vpack.c.bf16 %v693, %v691
      %v736 = vpack.c.bf16 %v696, %v694
      %v737 = vpack.c.bf16 %v697, %v695
      %v738 = vpack.c.bf16 %v700, %v698
      %v739 = vpack.c.bf16 %v701, %v699
      %v740 = vpack.c.bf16 %v704, %v702
      %v741 = vpack.c.bf16 %v705, %v703
      %v742 = vpack.c.bf16 %v708, %v706
      %v743 = vpack.c.bf16 %v709, %v707
      %v744 = vpack.c.bf16 %v712, %v710
      %v745 = vpack.c.bf16 %v713, %v711
      %v778 = vunpack.c.l.b16 %v714
      %v779 = vunpack.c.l.b16 %v715
      %v780 = vunpack.c.h.b16 %v714
      %v781 = vunpack.c.h.b16 %v715
      %v782 = vunpack.c.l.b16 %v716
      %v783 = vunpack.c.l.b16 %v717
      %v784 = vunpack.c.h.b16 %v716
      %v785 = vunpack.c.h.b16 %v717
      %v786 = vunpack.c.l.b16 %v718
      %v787 = vunpack.c.l.b16 %v719
      %v788 = vunpack.c.h.b16 %v718
      %v789 = vunpack.c.h.b16 %v719
      %v790 = vunpack.c.l.b16 %v720
      %v791 = vunpack.c.l.b16 %v721
      %v792 = vunpack.c.h.b16 %v720
      %v793 = vunpack.c.h.b16 %v721
      %v794 = vunpack.c.l.b16 %v722
      %v795 = vunpack.c.l.b16 %v723
      %v796 = vunpack.c.h.b16 %v722
      %v797 = vunpack.c.h.b16 %v723
      %v798 = vunpack.c.l.b16 %v724
      %v799 = vunpack.c.l.b16 %v725
      %v800 = vunpack.c.h.b16 %v724
      %v801 = vunpack.c.h.b16 %v725
      %v802 = vunpack.c.l.b16 %v726
      %v803 = vunpack.c.l.b16 %v727
      %v804 = vunpack.c.h.b16 %v726
      %v805 = vunpack.c.h.b16 %v727
      %v806 = vunpack.c.l.b16 %v728
      %v807 = vunpack.c.l.b16 %v729
      %v808 = vunpack.c.h.b16 %v728
      %v809 = vunpack.c.h.b16 %v729
      %v810 = vunpack.c.l.b16 %v730
      %v811 = vunpack.c.l.b16 %v731
      %v812 = vunpack.c.h.b16 %v730
      %v813 = vunpack.c.h.b16 %v731
      %v814 = vunpack.c.l.b16 %v732
      %v815 = vunpack.c.l.b16 %v733
      %v816 = vunpack.c.h.b16 %v732
      %v817 = vunpack.c.h.b16 %v733
      %v818 = vunpack.c.l.b16 %v734
      %v819 = vunpack.c.l.b16 %v735
      %v820 = vunpack.c.h.b16 %v734
      %v821 = vunpack.c.h.b16 %v735
      %v822 = vunpack.c.l.b16 %v736
      %v823 = vunpack.c.l.b16 %v737
      %v824 = vunpack.c.h.b16 %v736
      %v825 = vunpack.c.h.b16 %v737
      %v826 = vunpack.c.l.b16 %v738
      %v827 = vunpack.c.l.b16 %v739
      %v828 = vunpack.c.h.b16 %v738
      %v829 = vunpack.c.h.b16 %v739
      %v830 = vunpack.c.l.b16 %v740
      %v831 = vunpack.c.l.b16 %v741
      %v832 = vunpack.c.h.b16 %v740
      %v833 = vunpack.c.h.b16 %v741
      %v834 = vunpack.c.l.b16 %v742
      %v835 = vunpack.c.l.b16 %v743
      %v836 = vunpack.c.h.b16 %v742
      %v837 = vunpack.c.h.b16 %v743
      %v838 = vunpack.c.l.b16 %v744
      %v839 = vunpack.c.l.b16 %v745
      %v840 = vunpack.c.h.b16 %v744
      %v841 = vunpack.c.h.b16 %v745
      %v842 = vpack.c.b16 %v779, %v778
      %v843 = vpack.c.b16 %v781, %v780
      %v844 = vpack.c.b16 %v783, %v782
      %v845 = vpack.c.b16 %v785, %v784
      %v846 = vpack.c.b16 %v787, %v786
      %v847 = vpack.c.b16 %v789, %v788
      %v848 = vpack.c.b16 %v791, %v790
      %v849 = vpack.c.b16 %v793, %v792
      %v850 = vpack.c.b16 %v795, %v794
      %v851 = vpack.c.b16 %v797, %v796
      %v852 = vpack.c.b16 %v799, %v798
      %v853 = vpack.c.b16 %v801, %v800
      %v854 = vpack.c.b16 %v803, %v802
      %v855 = vpack.c.b16 %v805, %v804
      %v856 = vpack.c.b16 %v807, %v806
      %v857 = vpack.c.b16 %v809, %v808
      %v858 = vpack.c.b16 %v811, %v810
      %v859 = vpack.c.b16 %v813, %v812
      %v860 = vpack.c.b16 %v815, %v814
      %v861 = vpack.c.b16 %v817, %v816
      %v862 = vpack.c.b16 %v819, %v818
      %v863 = vpack.c.b16 %v821, %v820
      %v864 = vpack.c.b16 %v823, %v822
      %v865 = vpack.c.b16 %v825, %v824
      %v866 = vpack.c.b16 %v827, %v826
      %v867 = vpack.c.b16 %v829, %v828
      %v868 = vpack.c.b16 %v831, %v830
      %v869 = vpack.c.b16 %v833, %v832
      %v870 = vpack.c.b16 %v835, %v834
      %v871 = vpack.c.b16 %v837, %v836
      %v872 = vpack.c.b16 %v839, %v838
      %v873 = vpack.c.b16 %v841, %v840
      %906 = vst [vmem:[#allocation6] sm:$0xff] %v842
      %907 = vst [vmem:[#allocation6 + $0x8] sm:$0xff] %v843
      %908 = vst [vmem:[#allocation6 + $0x10] sm:$0xff] %v844
      %909 = vst [vmem:[#allocation6 + $0x18] sm:$0xff] %v845
      %910 = vst [vmem:[#allocation6 + $0x20] sm:$0xff] %v846
      %911 = vst [vmem:[#allocation6 + $0x28] sm:$0xff] %v847
      %912 = vst [vmem:[#allocation6 + $0x30] sm:$0xff] %v848
      %913 = vst [vmem:[#allocation6 + $0x38] sm:$0xff] %v849
      %914 = vst [vmem:[#allocation6 + $0x40] sm:$0xff] %v850
      %915 = vst [vmem:[#allocation6 + $0x48] sm:$0xff] %v851
      %916 = vst [vmem:[#allocation6 + $0x50] sm:$0xff] %v852
      %917 = vst [vmem:[#allocation6 + $0x58] sm:$0xff] %v853
      %918 = vst [vmem:[#allocation6 + $0x60] sm:$0xff] %v854
      %919 = vst [vmem:[#allocation6 + $0x68] sm:$0xff] %v855
      %920 = vst [vmem:[#allocation6 + $0x70] sm:$0xff] %v856
      %921 = vst [vmem:[#allocation6 + $0x78] sm:$0xff] %v857
      %922 = vst [vmem:[#allocation6 + $0x80] sm:$0xff] %v858
      %923 = vst [vmem:[#allocation6 + $0x88] sm:$0xff] %v859
      %924 = vst [vmem:[#allocation6 + $0x90] sm:$0xff] %v860
      %925 = vst [vmem:[#allocation6 + $0x98] sm:$0xff] %v861
      %926 = vst [vmem:[#allocation6 + $0xa0] sm:$0xff] %v862
      %927 = vst [vmem:[#allocation6 + $0xa8] sm:$0xff] %v863
      %928 = vst [vmem:[#allocation6 + $0xb0] sm:$0xff] %v864
      %929 = vst [vmem:[#allocation6 + $0xb8] sm:$0xff] %v865
      %930 = vst [vmem:[#allocation6 + $0xc0] sm:$0xff] %v866
      %931 = vst [vmem:[#allocation6 + $0xc8] sm:$0xff] %v867
      %932 = vst [vmem:[#allocation6 + $0xd0] sm:$0xff] %v868
      %933 = vst [vmem:[#allocation6 + $0xd8] sm:$0xff] %v869
      %934 = vst [vmem:[#allocation6 + $0xe0] sm:$0xff] %v870
      %935 = vst [vmem:[#allocation6 + $0xe8] sm:$0xff] %v871
      %936 = vst [vmem:[#allocation6 + $0xf0] sm:$0xff] %v872
      %937 = vst [vmem:[#allocation6 + $0xf8] sm:$0xff] %v873
    $region17: #{_gram_upper_device.1} parent=1 // pred_fallthru
      _
    // Predicated region
    $region18: #{_gram_upper_device.1} parent=1 // pred_check
      _
    $region19: #{_gram_upper_device.1} parent=1 // pred_check_branch
      %939 = sbr.rel (0) target = $region21
    $region20: #{_gram_upper_device.1} parent=1 // pred_region
      %s940 = sld [smem:[#allocation4]]
      %s941 = sld [smem:[#allocation5]]
      %s942 = smul.u32 32, %s940
      %s943 = smul.u32 2, %s941
      %s945 = ssub.s32 4096, 4096
      %946 = vsyncadd [#allocation7], %s945
      %s947 = smul.addr %s942, 2
      %s948 = sadd.s32 %s943, %s947
      %s949 = smul.addr %s948, 64
      %s950 = scalar_lea.hbm %s4, %s949
      %s951 = sshll.u32 [#allocation6], 4
      %s952 = int_to_ptr.vmem [resolvable:$true] %s951
      %957 = dma.vmem_to_hbm [thread:$0]  %s952, 4096, %s950, [#allocation7], 128, 128, 8
    $region21: #{_gram_upper_device.1} parent=1 // pred_fallthru
      _
    // Predicated region
    $region22: #{_gram_upper_device.1} parent=1 // pred_check
      _
    $region23: #{_gram_upper_device.1} parent=1 // pred_check_branch
      %959 = sbr.rel (0) target = $region25
    $region24: #{_gram_upper_device.1} parent=1 // pred_region
      %960 = dma.done [#allocation7], 4096
    $region25: #{_gram_upper_device.1} parent=1 // pred_fallthru
      _
    %961 = vsyncpa [#allocation7], 1

</llo_original>
